<compile_context>
chip_gen: v7x
topology: tpu7x:2x2x1
jax: 0.10.0
libtpu: 0.0.40
codegen_flags: <defaults>
</compile_context>

<pallas_src>
import jax
import jax.numpy as jnp
from jax import lax
from jax.experimental import pallas as pl
from jax.experimental.pallas import tpu as pltpu


def _round_up(v, m):
    return (v + m - 1) // m * m


def _tpu_vmem_capacity_bytes():
    try:
        return int(pltpu.get_tpu_info().vmem_capacity_bytes)
    except Exception:
        return 64 << 20          # conservative default (v7x per-core VMEM)


def _block_bytes(b_t, cin_t, cout_t, mt):
    """Approx VMEM for one pipelined grid step: double-buffered re/im f32
    x / w / out blocks, plus the (worst-case spilled) carried accumulator."""
    x = b_t * cin_t * mt
    w = cin_t * cout_t * mt
    o = b_t * cout_t * mt
    return 2 * 2 * 4 * (x + w + o) + 2 * 4 * o


def _plan_tiles(cin, cout, m, *, nominal_bt, budget):
    """Pick mode / Cout / Cin tiling that fits the VMEM budget.

    Preference order: keep Cin whole in the block (no reduction grid axis,
    x reused across Cout tiles) > large lane-dense mode tiles > large Cout
    tiles.  Full dims are used unpadded (the (8,128) rule exempts full dims).
    """
    m_ceil = _round_up(m, 128)
    mt_opts = [c for c in (1024, 512, 256, 128) if c <= m_ceil]

    cout_opts = [(cout, cout)]                      # full dim: no padding
    for t in (64, 32, 16, 8):
        if t < cout:
            cout_opts.append((t, _round_up(cout, t)))

    cin_opts = []
    if cin <= 64:                                   # whole-in-block preferred
        cin_opts.append((cin, cin, False))
    for t in (32, 16, 8):
        if t < cin:
            cin_opts.append((t, _round_up(cin, t), True))
    if not cin_opts:
        cin_opts = [(cin, cin, False)]

    for cin_t, cin_p, split in cin_opts:
        for mt in mt_opts:
            for cout_t, cout_p in cout_opts:
                if _block_bytes(nominal_bt, cin_t, cout_t, mt) <= budget:
                    return dict(Mt=mt, Mp=_round_up(m, mt),
                                Cout_t=cout_t, Cout_p=cout_p,
                                Cin_t=cin_t, Cin_p=cin_p, split_cin=split)

    # Fallback: smallest blocks everywhere (still correct, may exceed budget).
    cin_t, cin_p, split = cin_opts[-1]
    cout_t, cout_p = cout_opts[-1]
    return dict(Mt=128, Mp=_round_up(m, 128), Cout_t=cout_t, Cout_p=cout_p,
                Cin_t=cin_t, Cin_p=cin_p, split_cin=split)


def _make_spectral_kernel(reduce_axis):
    """Complex channel-mixing kernel.

    xr/xi: (B_t, Cin_t, Mt)   wr/wi: (Cin_t, Cout_t, Mt)
    out:   (B_t, Cout_t, Mt)  (accumulated across the Cin grid axis if any).
    """

    def kernel(xr_ref, xi_ref, wr_ref, wi_ref, or_ref, oi_ref):
        cin_t = xr_ref.shape[1]
        zeros = jnp.zeros(or_ref.shape, jnp.float32)

        def body(i, carry):
            # Ref-side per-channel loads; i is static thanks to unroll=True,
            # so pl.ds(i, 1) sublane slices lower cleanly.
            acc_r, acc_i = carry
            xr = xr_ref[:, pl.ds(i, 1), :]          # (B_t, 1, Mt)
            xi = xi_ref[:, pl.ds(i, 1), :]
            wr = wr_ref[pl.ds(i, 1), :, :]          # (1, Cout_t, Mt)
            wi = wi_ref[pl.ds(i, 1), :, :]
            # complex MAC on the VPU; accumulate in the loop carry (no per-step
            # VMEM round trip of the accumulator).
            return (acc_r + (xr * wr - xi * wi),
                    acc_i + (xr * wi + xi * wr))

        acc_r, acc_i = lax.fori_loop(0, cin_t, body, (zeros, zeros),
                                     unroll=True)

        if reduce_axis is None:
            or_ref[...] = acc_r
            oi_ref[...] = acc_i
        else:
            ci = pl.program_id(reduce_axis)

            @pl.when(ci == 0)
            def _():
                or_ref[...] = acc_r
                oi_ref[...] = acc_i

            @pl.when(ci != 0)
            def _():
                # Output block is resident across the Cin reduction axis; add
                # the partial sum directly (no separate scratch accumulator).
                or_ref[...] = or_ref[...] + acc_r
                oi_ref[...] = oi_ref[...] + acc_i

    return kernel


def _spectral_contract(x_r, x_i, w_r, w_i, plan, b_t, vmem_limit):
    """out[b,o,m] = sum_i (x_r + j x_i)[b,i,m] * (w_r + j w_i)[i,o,m].

    x_*: (B, Cin_p, Mp) f32,  w_*: (Cin_p, Cout_p, Mp) f32 (pre-padded).
    Returns two (B, Cout_p, Mp) f32 arrays (real, imag).
    """
    B = x_r.shape[0]
    Mt, Mp = plan["Mt"], plan["Mp"]
    Cout_t, Cout_p = plan["Cout_t"], plan["Cout_p"]
    Cin_t, Cin_p, split = plan["Cin_t"], plan["Cin_p"], plan["split_cin"]

    if split:
        grid = (B // b_t, Mp // Mt, Cout_p // Cout_t, Cin_p // Cin_t)
        x_map = lambda bi, mi, oi, ci: (bi, ci, mi)
        w_map = lambda bi, mi, oi, ci: (ci, oi, mi)
        o_map = lambda bi, mi, oi, ci: (bi, oi, mi)
        semantics = ("parallel", "parallel", "parallel", "arbitrary")
        kernel = _make_spectral_kernel(reduce_axis=3)
    else:
        # oi is the fastest axis and x's index_map ignores it -> x blocks are
        # fetched once per (batch, mode) tile, not once per Cout tile.
        grid = (B // b_t, Mp // Mt, Cout_p // Cout_t)
        x_map = lambda bi, mi, oi: (bi, 0, mi)
        w_map = lambda bi, mi, oi: (0, oi, mi)
        o_map = lambda bi, mi, oi: (bi, oi, mi)
        semantics = ("parallel", "parallel", "parallel")
        kernel = _make_spectral_kernel(reduce_axis=None)

    out_sd = jax.ShapeDtypeStruct((B, Cout_p, Mp), jnp.float32)
    return pl.pallas_call(
        kernel,
        out_shape=(out_sd, out_sd),
        grid_spec=pltpu.PrefetchScalarGridSpec(
            num_scalar_prefetch=0,
            grid=grid,
            in_specs=[
                pl.BlockSpec((b_t, Cin_t, Mt), x_map),
                pl.BlockSpec((b_t, Cin_t, Mt), x_map),
                pl.BlockSpec((Cin_t, Cout_t, Mt), w_map),
                pl.BlockSpec((Cin_t, Cout_t, Mt), w_map),
            ],
            out_specs=(
                pl.BlockSpec((b_t, Cout_t, Mt), o_map),
                pl.BlockSpec((b_t, Cout_t, Mt), o_map),
            ),
        ),
        compiler_params=pltpu.CompilerParams(
            dimension_semantics=semantics,
            vmem_limit_bytes=vmem_limit),
    )(x_r, x_i, w_r, w_i)


class FactorizedSpectralConvJAX:
    """JAX/Pallas equivalent of FactorizedSpectralConv (PyTorch defaults:
    separable=False, implementation='reconstructed', fft_norm='backward',
    bias=True, 2-D n_modes).  Only the dense 'reconstructed' contraction path
    is covered; CP/Tucker/TT factorized contractions are not implemented."""

    def __init__(self, in_channels, out_channels, n_modes, bias=True,
                 n_layers=1, fft_norm="backward", key=None):
        assert len(n_modes) == 2, "this implementation covers the 2-D case"
        self.in_channels = in_channels
        self.out_channels = out_channels
        self.n_modes = tuple(n_modes)
        self.order = len(n_modes)
        self.half_n_modes = [m // 2 for m in n_modes]
        self.n_layers = n_layers
        self.fft_norm = fft_norm
        self.n_weights_per_layer = 2 ** (self.order - 1)     # = 2 for 2-D
        m0, m1 = self.half_n_modes
        self.M = 2 * m0 * m1                                  # fused mode axis

        init_std = 1.0 / (in_channels * out_channels)         # init_std='auto'
        if key is None:
            key = jax.random.PRNGKey(0)
        kwr, kwi, kb = jax.random.split(key, 3)
        wshape = (self.n_weights_per_layer * n_layers,
                  in_channels, out_channels, *self.half_n_modes)
        self.w_real = init_std * jax.random.normal(kwr, wshape, jnp.float32)
        self.w_imag = init_std * jax.random.normal(kwi, wshape, jnp.float32)
        if bias:
            bshape = (n_layers, out_channels) + (1,) * self.order
            self.bias = init_std * jax.random.normal(kb, bshape, jnp.float32)
        else:
            self.bias = None

        # --- generation-aware tiling plan + vmem limit ---------------------
        cap = _tpu_vmem_capacity_bytes()
        self._vmem_limit = min(int(cap * 0.8), 112 << 20)
        self._tile_budget = min(int(cap * 0.45), 56 << 20)
        self._plan = _plan_tiles(in_channels, out_channels, self.M,
                                 nominal_bt=1, budget=self._tile_budget)

        # --- fused + padded spectral weights, precomputed once per layer ---
        plan = self._plan
        self._w_packed = []
        for layer in range(n_layers):
            base = self.n_weights_per_layer * layer
            packed = []
            for w in (self.w_real, self.w_imag):
                wl = jnp.concatenate([w[base], w[base + 1]], axis=2)
                wl = wl.reshape(in_channels, out_channels, self.M)
                wl = jnp.pad(wl, ((0, plan["Cin_p"] - in_channels),
                                  (0, plan["Cout_p"] - out_channels),
                                  (0, plan["Mp"] - self.M)))
                packed.append(wl)
            self._w_packed.append(tuple(packed))

    def _pick_bt(self, B):
        """Batch block size: as large as the VMEM budget allows (fewest weight
        re-fetches), but split so both v7x TensorCores have work."""
        plan = self._plan
        divisors = [d for d in range(B, 0, -1) if B % d == 0]
        b_t = 1
        for d in divisors:
            if _block_bytes(d, plan["Cin_t"], plan["Cout_t"],
                            plan["Mt"]) <= self._tile_budget:
                b_t = d
                break
        n_other = (plan["Mp"] // plan["Mt"]) * (plan["Cout_p"] // plan["Cout_t"])
        while b_t > 1 and n_other * (B // b_t) < 2:
            b_t = max(d for d in divisors if d < b_t)
        return b_t

    def __call__(self, x, indices=0):
        B, C, H, W = x.shape
        m0, m1 = self.half_n_modes
        Cout = self.out_channels
        M = self.M
        Wf = W // 2 + 1
        plan = self._plan

        x_ft = jnp.fft.rfftn(x.astype(jnp.float32), axes=(-2, -1),
                             norm=self.fft_norm)

        # Fuse the two corner mode blocks onto one flattened (lane) mode axis.
        # TODO(synk): fold this gather into the kernel's index_map (size-2
        # leading block axis) to save one extra HBM pass over the spectrum.
        xa = x_ft[:, :, :m0, :m1]                  # rows[:m0]  -> weight idx +0
        xb = x_ft[:, :, H - m0:, :m1]              # rows[-m0:] -> weight idx +1
        x_modes = jnp.concatenate([xa, xb], axis=2).reshape(B, C, M)

        def pad(a):
            return jnp.pad(a, ((0, 0), (0, plan["Cin_p"] - C),
                               (0, plan["Mp"] - M)))

        x_r = pad(jnp.real(x_modes))
        x_i = pad(jnp.imag(x_modes))

        w_r, w_i = self._w_packed[indices]
        b_t = self._pick_bt(B)
        obr, obi = _spectral_contract(x_r, x_i, w_r, w_i, plan, b_t,
                                      self._vmem_limit)

        ob = (obr[:, :Cout, :M] + 1j * obi[:, :Cout, :M]).astype(jnp.complex64)
        ob = ob.reshape(B, Cout, 2 * m0, m1)

        out_ft = jnp.zeros((B, Cout, H, Wf), dtype=jnp.complex64)
        out_ft = out_ft.at[:, :, :m0, :m1].set(ob[:, :, :m0])
        out_ft = out_ft.at[:, :, H - m0:, :m1].set(ob[:, :, m0:])

        x_out = jnp.fft.irfftn(out_ft, s=(H, W), axes=(-2, -1),
                               norm=self.fft_norm)
        if self.bias is not None:
            x_out = x_out + self.bias[indices]
        return x_out

    # pure-JAX reference (same math, no Pallas) for correctness checking
    def reference(self, x, indices=0):
        B, C, H, W = x.shape
        m0, m1 = self.half_n_modes
        x_ft = jnp.fft.rfftn(x.astype(jnp.float32), axes=(-2, -1),
                             norm=self.fft_norm)
        Wf = W // 2 + 1
        out_ft = jnp.zeros((B, self.out_channels, H, Wf), dtype=jnp.complex64)
        row_slices = [slice(0, m0), slice(H - m0, H)]
        for i, rs in enumerate(row_slices):
            w_idx = self.n_weights_per_layer * indices + i
            w = self.w_real[w_idx] + 1j * self.w_imag[w_idx]
            ob = jnp.einsum("bixy,ioxy->boxy", x_ft[:, :, rs, :m1], w)
            out_ft = out_ft.at[:, :, rs, :m1].set(ob.astype(jnp.complex64))
        x_out = jnp.fft.irfftn(out_ft, s=(H, W), axes=(-2, -1),
                               norm=self.fft_norm)
        if self.bias is not None:
            x_out = x_out + self.bias[indices]
        return x_out


if __name__ == "__main__":
    key = jax.random.PRNGKey(0)
    k_x, k_mod = jax.random.split(key)

    B, Cin, Cout, H, W = 2, 4, 4, 16, 16
    n_modes = (16, 16)   # half_n_modes = (8, 8) -> fused M = 2*8*8 = 128 lanes

    x = jax.random.normal(k_x, (B, Cin, H, W), jnp.float32)
    conv = FactorizedSpectralConvJAX(Cin, Cout, n_modes, bias=True,
                                     n_layers=1, fft_norm="backward",
                                     key=k_mod)

    out = jax.block_until_ready(conv(x, indices=0))
    ref = jax.block_until_ready(conv.reference(x, indices=0))

    assert out.shape == (B, Cout, H, W)
    assert jnp.allclose(out, ref, atol=1e-5, rtol=1e-5)

    print("KERNEL_OK")
</pallas_src>

<mosaic_0001>
module attributes {stable_mosaic.version = 11 : i64} {
  func.func @kernel(%arg0: i32, %arg1: i32, %arg2: i32, %arg3: memref<1x4x128xf32, #tpu.memory_space<vmem>>, %arg4: memref<1x4x128xf32, #tpu.memory_space<vmem>>, %arg5: memref<4x4x128xf32, #tpu.memory_space<vmem>>, %arg6: memref<4x4x128xf32, #tpu.memory_space<vmem>>, %arg7: memref<1x4x128xf32, #tpu.memory_space<vmem>>, %arg8: memref<1x4x128xf32, #tpu.memory_space<vmem>>) attributes {dimension_semantics = [#tpu.dimension_semantics<parallel>, #tpu.dimension_semantics<parallel>, #tpu.dimension_semantics<parallel>], iteration_bounds = array<i64: 2, 1, 1>, scalar_prefetch = 0 : i64, scratch_operands = 0 : i64, tpu.core_type = #tpu.core_type<tc>, window_params = [{transform_indices = @transform_0, window_bounds = array<i64: 1, 4, 128>}, {transform_indices = @transform_1, window_bounds = array<i64: 1, 4, 128>}, {transform_indices = @transform_2, window_bounds = array<i64: 4, 4, 128>}, {transform_indices = @transform_3, window_bounds = array<i64: 4, 4, 128>}, {transform_indices = @transform_4, window_bounds = array<i64: 1, 4, 128>}, {transform_indices = @transform_5, window_bounds = array<i64: 1, 4, 128>}]} {
    %cst = arith.constant 0.000000e+00 : f32
    %0 = vector.broadcast %cst : f32 to vector<1x4x128xf32>
    %c0_i32 = arith.constant 0 : i32
    %c0 = arith.constant 0 : index
    %1 = arith.index_cast %c0_i32 : i32 to index
    %c0_0 = arith.constant 0 : index
    %2 = vector.load %arg3[%c0, %1, %c0_0] : memref<1x4x128xf32, #tpu.memory_space<vmem>>, vector<1x1x128xf32>
    %c0_1 = arith.constant 0 : index
    %3 = arith.index_cast %c0_i32 : i32 to index
    %c0_2 = arith.constant 0 : index
    %4 = vector.load %arg4[%c0_1, %3, %c0_2] : memref<1x4x128xf32, #tpu.memory_space<vmem>>, vector<1x1x128xf32>
    %5 = arith.index_cast %c0_i32 : i32 to index
    %c0_3 = arith.constant 0 : index
    %c0_4 = arith.constant 0 : index
    %6 = vector.load %arg5[%5, %c0_3, %c0_4] : memref<4x4x128xf32, #tpu.memory_space<vmem>>, vector<1x4x128xf32>
    %7 = arith.index_cast %c0_i32 : i32 to index
    %c0_5 = arith.constant 0 : index
    %c0_6 = arith.constant 0 : index
    %8 = vector.load %arg6[%7, %c0_5, %c0_6] : memref<4x4x128xf32, #tpu.memory_space<vmem>>, vector<1x4x128xf32>
    %9 = vector.broadcast %2 : vector<1x1x128xf32> to vector<1x4x128xf32>
    %10 = arith.mulf %9, %6 : vector<1x4x128xf32>
    %11 = vector.broadcast %4 : vector<1x1x128xf32> to vector<1x4x128xf32>
    %12 = arith.mulf %11, %8 : vector<1x4x128xf32>
    %13 = arith.subf %10, %12 : vector<1x4x128xf32>
    %14 = arith.addf %0, %13 : vector<1x4x128xf32>
    %15 = vector.broadcast %2 : vector<1x1x128xf32> to vector<1x4x128xf32>
    %16 = arith.mulf %15, %8 : vector<1x4x128xf32>
    %17 = vector.broadcast %4 : vector<1x1x128xf32> to vector<1x4x128xf32>
    %18 = arith.mulf %17, %6 : vector<1x4x128xf32>
    %19 = arith.addf %16, %18 : vector<1x4x128xf32>
    %20 = arith.addf %0, %19 : vector<1x4x128xf32>
    %c1_i32 = arith.constant 1 : i32
    %c0_7 = arith.constant 0 : index
    %21 = arith.index_cast %c1_i32 : i32 to index
    %c0_8 = arith.constant 0 : index
    %22 = vector.load %arg3[%c0_7, %21, %c0_8] : memref<1x4x128xf32, #tpu.memory_space<vmem>>, vector<1x1x128xf32>
    %c0_9 = arith.constant 0 : index
    %23 = arith.index_cast %c1_i32 : i32 to index
    %c0_10 = arith.constant 0 : index
    %24 = vector.load %arg4[%c0_9, %23, %c0_10] : memref<1x4x128xf32, #tpu.memory_space<vmem>>, vector<1x1x128xf32>
    %25 = arith.index_cast %c1_i32 : i32 to index
    %c0_11 = arith.constant 0 : index
    %c0_12 = arith.constant 0 : index
    %26 = vector.load %arg5[%25, %c0_11, %c0_12] : memref<4x4x128xf32, #tpu.memory_space<vmem>>, vector<1x4x128xf32>
    %27 = arith.index_cast %c1_i32 : i32 to index
    %c0_13 = arith.constant 0 : index
    %c0_14 = arith.constant 0 : index
    %28 = vector.load %arg6[%27, %c0_13, %c0_14] : memref<4x4x128xf32, #tpu.memory_space<vmem>>, vector<1x4x128xf32>
    %29 = vector.broadcast %22 : vector<1x1x128xf32> to vector<1x4x128xf32>
    %30 = arith.mulf %29, %26 : vector<1x4x128xf32>
    %31 = vector.broadcast %24 : vector<1x1x128xf32> to vector<1x4x128xf32>
    %32 = arith.mulf %31, %28 : vector<1x4x128xf32>
    %33 = arith.subf %30, %32 : vector<1x4x128xf32>
    %34 = arith.addf %14, %33 : vector<1x4x128xf32>
    %35 = vector.broadcast %22 : vector<1x1x128xf32> to vector<1x4x128xf32>
    %36 = arith.mulf %35, %28 : vector<1x4x128xf32>
    %37 = vector.broadcast %24 : vector<1x1x128xf32> to vector<1x4x128xf32>
    %38 = arith.mulf %37, %26 : vector<1x4x128xf32>
    %39 = arith.addf %36, %38 : vector<1x4x128xf32>
    %40 = arith.addf %20, %39 : vector<1x4x128xf32>
    %c2_i32 = arith.constant 2 : i32
    %c0_15 = arith.constant 0 : index
    %41 = arith.index_cast %c2_i32 : i32 to index
    %c0_16 = arith.constant 0 : index
    %42 = vector.load %arg3[%c0_15, %41, %c0_16] : memref<1x4x128xf32, #tpu.memory_space<vmem>>, vector<1x1x128xf32>
    %c0_17 = arith.constant 0 : index
    %43 = arith.index_cast %c2_i32 : i32 to index
    %c0_18 = arith.constant 0 : index
    %44 = vector.load %arg4[%c0_17, %43, %c0_18] : memref<1x4x128xf32, #tpu.memory_space<vmem>>, vector<1x1x128xf32>
    %45 = arith.index_cast %c2_i32 : i32 to index
    %c0_19 = arith.constant 0 : index
    %c0_20 = arith.constant 0 : index
    %46 = vector.load %arg5[%45, %c0_19, %c0_20] : memref<4x4x128xf32, #tpu.memory_space<vmem>>, vector<1x4x128xf32>
    %47 = arith.index_cast %c2_i32 : i32 to index
    %c0_21 = arith.constant 0 : index
    %c0_22 = arith.constant 0 : index
    %48 = vector.load %arg6[%47, %c0_21, %c0_22] : memref<4x4x128xf32, #tpu.memory_space<vmem>>, vector<1x4x128xf32>
    %49 = vector.broadcast %42 : vector<1x1x128xf32> to vector<1x4x128xf32>
    %50 = arith.mulf %49, %46 : vector<1x4x128xf32>
    %51 = vector.broadcast %44 : vector<1x1x128xf32> to vector<1x4x128xf32>
    %52 = arith.mulf %51, %48 : vector<1x4x128xf32>
    %53 = arith.subf %50, %52 : vector<1x4x128xf32>
    %54 = arith.addf %34, %53 : vector<1x4x128xf32>
    %55 = vector.broadcast %42 : vector<1x1x128xf32> to vector<1x4x128xf32>
    %56 = arith.mulf %55, %48 : vector<1x4x128xf32>
    %57 = vector.broadcast %44 : vector<1x1x128xf32> to vector<1x4x128xf32>
    %58 = arith.mulf %57, %46 : vector<1x4x128xf32>
    %59 = arith.addf %56, %58 : vector<1x4x128xf32>
    %60 = arith.addf %40, %59 : vector<1x4x128xf32>
    %c3_i32 = arith.constant 3 : i32
    %c0_23 = arith.constant 0 : index
    %61 = arith.index_cast %c3_i32 : i32 to index
    %c0_24 = arith.constant 0 : index
    %62 = vector.load %arg3[%c0_23, %61, %c0_24] : memref<1x4x128xf32, #tpu.memory_space<vmem>>, vector<1x1x128xf32>
    %c0_25 = arith.constant 0 : index
    %63 = arith.index_cast %c3_i32 : i32 to index
    %c0_26 = arith.constant 0 : index
    %64 = vector.load %arg4[%c0_25, %63, %c0_26] : memref<1x4x128xf32, #tpu.memory_space<vmem>>, vector<1x1x128xf32>
    %65 = arith.index_cast %c3_i32 : i32 to index
    %c0_27 = arith.constant 0 : index
    %c0_28 = arith.constant 0 : index
    %66 = vector.load %arg5[%65, %c0_27, %c0_28] : memref<4x4x128xf32, #tpu.memory_space<vmem>>, vector<1x4x128xf32>
    %67 = arith.index_cast %c3_i32 : i32 to index
    %c0_29 = arith.constant 0 : index
    %c0_30 = arith.constant 0 : index
    %68 = vector.load %arg6[%67, %c0_29, %c0_30] : memref<4x4x128xf32, #tpu.memory_space<vmem>>, vector<1x4x128xf32>
    %69 = vector.broadcast %62 : vector<1x1x128xf32> to vector<1x4x128xf32>
    %70 = arith.mulf %69, %66 : vector<1x4x128xf32>
    %71 = vector.broadcast %64 : vector<1x1x128xf32> to vector<1x4x128xf32>
    %72 = arith.mulf %71, %68 : vector<1x4x128xf32>
    %73 = arith.subf %70, %72 : vector<1x4x128xf32>
    %74 = arith.addf %54, %73 : vector<1x4x128xf32>
    %75 = vector.broadcast %62 : vector<1x1x128xf32> to vector<1x4x128xf32>
    %76 = arith.mulf %75, %68 : vector<1x4x128xf32>
    %77 = vector.broadcast %64 : vector<1x1x128xf32> to vector<1x4x128xf32>
    %78 = arith.mulf %77, %66 : vector<1x4x128xf32>
    %79 = arith.addf %76, %78 : vector<1x4x128xf32>
    %80 = arith.addf %60, %79 : vector<1x4x128xf32>
    %c4_i32 = arith.constant 4 : i32
    %c0_31 = arith.constant 0 : index
    %c0_32 = arith.constant 0 : index
    %c0_33 = arith.constant 0 : index
    %81 = vector.load %arg7[%c0_31, %c0_32, %c0_33] : memref<1x4x128xf32, #tpu.memory_space<vmem>>, vector<1x4x128xf32>
    tpu.vector_store %arg7[%c0_31, %c0_32, %c0_33], %74 {strides = array<i32>} : memref<1x4x128xf32, #tpu.memory_space<vmem>>, vector<1x4x128xf32>,
    %c0_34 = arith.constant 0 : index
    %c0_35 = arith.constant 0 : index
    %c0_36 = arith.constant 0 : index
    %82 = vector.load %arg8[%c0_34, %c0_35, %c0_36] : memref<1x4x128xf32, #tpu.memory_space<vmem>>, vector<1x4x128xf32>
    tpu.vector_store %arg8[%c0_34, %c0_35, %c0_36], %80 {strides = array<i32>} : memref<1x4x128xf32, #tpu.memory_space<vmem>>, vector<1x4x128xf32>,
    return
  }
  func.func @transform_0(%arg0: i32, %arg1: i32, %arg2: i32) -> (i32, i32, i32) {
    %c0_i32 = arith.constant 0 : i32
    %c0_i32_0 = arith.constant 0 : i32
    return %arg0, %c0_i32, %arg1 : i32, i32, i32
  }
  func.func @transform_1(%arg0: i32, %arg1: i32, %arg2: i32) -> (i32, i32, i32) {
    %c0_i32 = arith.constant 0 : i32
    %c0_i32_0 = arith.constant 0 : i32
    return %arg0, %c0_i32, %arg1 : i32, i32, i32
  }
  func.func @transform_2(%arg0: i32, %arg1: i32, %arg2: i32) -> (i32, i32, i32) {
    %c0_i32 = arith.constant 0 : i32
    %c0_i32_0 = arith.constant 0 : i32
    return %c0_i32, %arg2, %arg1 : i32, i32, i32
  }
  func.func @transform_3(%arg0: i32, %arg1: i32, %arg2: i32) -> (i32, i32, i32) {
    %c0_i32 = arith.constant 0 : i32
    %c0_i32_0 = arith.constant 0 : i32
    return %c0_i32, %arg2, %arg1 : i32, i32, i32
  }
  func.func @transform_4(%arg0: i32, %arg1: i32, %arg2: i32) -> (i32, i32, i32) {
    %c0_i32 = arith.constant 0 : i32
    return %arg0, %arg2, %arg1 : i32, i32, i32
  }
  func.func @transform_5(%arg0: i32, %arg1: i32, %arg2: i32) -> (i32, i32, i32) {
    %c0_i32 = arith.constant 0 : i32
    return %arg0, %arg2, %arg1 : i32, i32, i32
  }
}

</mosaic_0001>

<llo_original>
// kernel: tpu_custom_call.1
$region0: #{tpu_custom_call.1}
  #allocation0 [shape = 'u32[]', space=smem, size = 0x4, offset = 0x4, fixed_abs, tag = 'smem constant byte address 0x4 - core index']
  #allocation1 [shape = 'u32[144,128]{1,0:T(1,128)}', space=vmem, size = 0x12000, scoped, tag = 'internal scratch']
  %s0 = inlined_call_operand.hbm [shape: f32[2,4,128], index: 0, kind: input, shape index: {}]
  %s1 = inlined_call_operand.hbm [shape: f32[2,4,128], index: 1, kind: input, shape index: {}]
  %s2 = inlined_call_operand.hbm [shape: f32[4,4,128], index: 2, kind: input, shape index: {}]
  %s3 = inlined_call_operand.hbm [shape: f32[4,4,128], index: 3, kind: input, shape index: {}]
  %s4 = inlined_call_operand.hbm [shape: f32[2,4,128], index: 4, kind: output, shape index: {0}]
  %s5 = inlined_call_operand.hbm [shape: f32[2,4,128], index: 5, kind: output, shape index: {1}]
  %6 = xla_tuple %s4, %s5
  %s7 = sld [smem:[#allocation0]]
  $region73: #{tpu_custom_call.1} parent=0
    _
  %s9 = ssub.s32 1, %s7
  %s10 = scalar_select 0, %s9, %s7
  $region1: #{tpu_custom_call.1} parent=0
    #allocation2 [shape = 'u8[4096]{0}', space=vmem, size = 0x1000, scoped, tag = 'input window, operand 0']
    #allocation3 [shape = 's32[2]{0}', space=sflag, size = 0x8, scoped, tag = 'scoped memory for tpu_custom_call.1']
    #allocation4 [shape = 's32[2]{0}', space=sflag, size = 0x8, scoped, tag = 'scoped memory for tpu_custom_call.1']
    #allocation5 [shape = 'u8[4096]{0}', space=vmem, size = 0x1000, scoped, tag = 'input window, operand 1']
    #allocation6 [shape = 's32[2]{0}', space=sflag, size = 0x8, scoped, tag = 'scoped memory for tpu_custom_call.1']
    #allocation7 [shape = 'u8[8192]{0}', space=vmem, size = 0x2000, scoped, tag = 'input window, operand 2, single buffered']
    #allocation8 [shape = 'u8[8192]{0}', space=vmem, size = 0x2000, scoped, tag = 'input window, operand 3, single buffered']
    #allocation9 [shape = 's32[1]{0}', space=sflag, size = 0x4, scoped, tag = 'scoped memory for tpu_custom_call.1']
    #allocation10 [shape = 'u8[4096]{0}', space=vmem, size = 0x1000, scoped, tag = 'output window, operand 0']
    #allocation11 [shape = 'u8[4096]{0}', space=vmem, size = 0x1000, scoped, tag = 'output window, operand 1']
    #allocation12 [shape = 's32[2]{0}', space=sflag, size = 0x8, scoped, tag = 'scoped memory for tpu_custom_call.1']
    %11 = vsyncpa [#allocation3], 0
    %s12 = scalar_lea.sflag [#allocation3], 1
    %13 = vsyncpa %s12, 0
    %14 = vsyncpa [#allocation6], 0
    %s15 = scalar_lea.sflag [#allocation6], 1
    %16 = vsyncpa %s15, 0
    %17 = vsyncpa [#allocation9], 0
    %18 = vsyncpa [#allocation4], 0
    %s19 = scalar_lea.sflag [#allocation4], 1
    %20 = vsyncpa %s19, 0
    %21 = vsyncpa [#allocation12], 0
    %s22 = scalar_lea.sflag [#allocation12], 1
    %23 = vsyncpa %s22, 0
    loop: start=0, step=1, limit=4
    $region2: #{tpu_custom_call.1} parent=1 // loop_pre_header
      _
    $region3: #{tpu_custom_call.1} parent=1 // loop_header
      %s25 = sphi 0, %s29
      %p26 = scmp.ge.s32.totalorder %s25, 4
      %s32 = sphi 0, %s51
      %s33 = sphi 0, %s47
      %s34 = sphi 0, %s43
      %s35 = sphi 0, %s32
      %s36 = sphi 0, %s33
      %s37 = sphi 0, %s34
      %s38 = sphi 0, %s35
      %s39 = sphi 0, %s36
      %s40 = sphi 0, %s37
      %s56 = sphi 0, %s58
      %s59 = sphi 0, %s56
      %s60 = sphi 0, %s59
      %s76 = sphi 0, %s60
      %s84 = sphi 0, %s86
      %s87 = sphi 0, %s84
      %s88 = sphi 0, %s87
      %s104 = sphi 0, %s88
      %s112 = sphi 0, %s114
      %s115 = sphi 0, %s112
      %s116 = sphi 0, %s115
      %s132 = sphi 0, %s116
      %s140 = sphi 0, %s142
      %s143 = sphi 0, %s140
      %s144 = sphi 0, %s143
      %s160 = sphi 0, %s144
      %s170 = sphi 0, %s172
      %s173 = sphi 0, %s170
      %s174 = sphi 0, %s173
      %s190 = sphi 0, %s174
      %s200 = sphi 0, %s202
      %s203 = sphi 0, %s200
      %s204 = sphi 0, %s203
      %s220 = sphi 0, %s204
    $region4: #{tpu_custom_call.1} parent=1 // loop_header_branch
      %28 = sbr.rel (%p26) target = $region8
    $region5: #{tpu_custom_call.1} parent=1 // loop_body
      %s30 = ssub.s32 %s25, 1
      %s31 = ssub.s32 %s25, 2
      %s41 = sadd.s32 1, %s34
      %p42 = scmp.ge.s32.totalorder %s41, 1
      %s43 = scalar_select %p42, 0, %s41
      %s44 = sadd.s32 1, %s33
      %s45 = scalar_select %p42, %s44, %s33
      %p46 = scmp.ge.s32.totalorder %s45, 1
      %s47 = scalar_select %p46, 0, %s45
      %s48 = sadd.s32 1, %s32
      %s49 = scalar_select %p46, %s48, %s32
      %p50 = scmp.ge.s32.totalorder %s49, 2
      %s51 = scalar_select %p50, 0, %s49
      %s52 = ssub.s32 %s32, %s51
      %s53 = ssub.s32 %s33, %s47
      %s54 = sor.u32 %s52, %s53
      %p55 = scmp.eq.s32.totalorder %s54, 0
      %s57 = sadd.s32 %s56, 1
      %s58 = scalar_select %p55, %s56, %s57
      %p61 = pneg %p55
      %p62 = scmp.eq.s32.totalorder %s25, 1
      %p63 = por %p61, %p62
      %p64 = scmp.ne.s32.totalorder %s56, %s59
      %p65 = scmp.eq.s32.totalorder %s25, 0
      %p66 = por %p64, %p65
      %p67 = scmp.ne.s32.totalorder %s56, %s59
      %p68 = scmp.eq.s32.totalorder %s30, 1
      %p69 = por %p67, %p68
      %p70 = scmp.ne.s32.totalorder %s59, %s60
      %p71 = scmp.eq.s32.totalorder %s30, 0
      %p72 = por %p70, %p71
      %p73 = scmp.ne.s32.totalorder %s59, %s60
      %p74 = scmp.eq.s32.totalorder %s31, 1
      %p75 = por %p73, %p74
      %p77 = scmp.ne.s32.totalorder %s60, %s76
      %p78 = scmp.eq.s32.totalorder %s31, 0
      %p79 = por %p77, %p78
      %s80 = ssub.s32 %s32, %s51
      %s81 = ssub.s32 %s33, %s47
      %s82 = sor.u32 %s80, %s81
      %p83 = scmp.eq.s32.totalorder %s82, 0
      %s85 = sadd.s32 %s84, 1
      %s86 = scalar_select %p83, %s84, %s85
      %p89 = pneg %p83
      %p90 = scmp.eq.s32.totalorder %s25, 1
      %p91 = por %p89, %p90
      %p92 = scmp.ne.s32.totalorder %s84, %s87
      %p93 = scmp.eq.s32.totalorder %s25, 0
      %p94 = por %p92, %p93
      %p95 = scmp.ne.s32.totalorder %s84, %s87
      %p96 = scmp.eq.s32.totalorder %s30, 1
      %p97 = por %p95, %p96
      %p98 = scmp.ne.s32.totalorder %s87, %s88
      %p99 = scmp.eq.s32.totalorder %s30, 0
      %p100 = por %p98, %p99
      %p101 = scmp.ne.s32.totalorder %s87, %s88
      %p102 = scmp.eq.s32.totalorder %s31, 1
      %p103 = por %p101, %p102
      %p105 = scmp.ne.s32.totalorder %s88, %s104
      %p106 = scmp.eq.s32.totalorder %s31, 0
      %p107 = por %p105, %p106
      %s108 = ssub.s32 %s34, %s43
      %s109 = ssub.s32 %s33, %s47
      %s110 = sor.u32 %s108, %s109
      %p111 = scmp.eq.s32.totalorder %s110, 0
      %s113 = sadd.s32 %s112, 1
      %s114 = scalar_select %p111, %s112, %s113
      %p117 = pneg %p111
      %p118 = scmp.eq.s32.totalorder %s25, 1
      %p119 = por %p117, %p118
      %p120 = scmp.ne.s32.totalorder %s112, %s115
      %p121 = scmp.eq.s32.totalorder %s25, 0
      %p122 = por %p120, %p121
      %p123 = scmp.ne.s32.totalorder %s112, %s115
      %p124 = scmp.eq.s32.totalorder %s30, 1
      %p125 = por %p123, %p124
      %p126 = scmp.ne.s32.totalorder %s115, %s116
      %p127 = scmp.eq.s32.totalorder %s30, 0
      %p128 = por %p126, %p127
      %p129 = scmp.ne.s32.totalorder %s115, %s116
      %p130 = scmp.eq.s32.totalorder %s31, 1
      %p131 = por %p129, %p130
      %p133 = scmp.ne.s32.totalorder %s116, %s132
      %p134 = scmp.eq.s32.totalorder %s31, 0
      %p135 = por %p133, %p134
      %s136 = ssub.s32 %s34, %s43
      %s137 = ssub.s32 %s33, %s47
      %s138 = sor.u32 %s136, %s137
      %p139 = scmp.eq.s32.totalorder %s138, 0
      %s141 = sadd.s32 %s140, 1
      %s142 = scalar_select %p139, %s140, %s141
      %p145 = pneg %p139
      %p146 = scmp.eq.s32.totalorder %s25, 1
      %p147 = por %p145, %p146
      %p148 = scmp.ne.s32.totalorder %s140, %s143
      %p149 = scmp.eq.s32.totalorder %s25, 0
      %p150 = por %p148, %p149
      %p151 = scmp.ne.s32.totalorder %s140, %s143
      %p152 = scmp.eq.s32.totalorder %s30, 1
      %p153 = por %p151, %p152
      %p154 = scmp.ne.s32.totalorder %s143, %s144
      %p155 = scmp.eq.s32.totalorder %s30, 0
      %p156 = por %p154, %p155
      %p157 = scmp.ne.s32.totalorder %s143, %s144
      %p158 = scmp.eq.s32.totalorder %s31, 1
      %p159 = por %p157, %p158
      %p161 = scmp.ne.s32.totalorder %s144, %s160
      %p162 = scmp.eq.s32.totalorder %s31, 0
      %p163 = por %p161, %p162
      %s164 = ssub.s32 %s32, %s51
      %s165 = ssub.s32 %s34, %s43
      %s166 = sor.u32 %s164, %s165
      %s167 = ssub.s32 %s33, %s47
      %s168 = sor.u32 %s166, %s167
      %p169 = scmp.eq.s32.totalorder %s168, 0
      %s171 = sadd.s32 %s170, 1
      %s172 = scalar_select %p169, %s170, %s171
      %p175 = pneg %p169
      %p176 = scmp.eq.s32.totalorder %s25, 1
      %p177 = por %p175, %p176
      %p178 = scmp.ne.s32.totalorder %s170, %s173
      %p179 = scmp.eq.s32.totalorder %s25, 0
      %p180 = por %p178, %p179
      %p181 = scmp.ne.s32.totalorder %s170, %s173
      %p182 = scmp.eq.s32.totalorder %s30, 1
      %p183 = por %p181, %p182
      %p184 = scmp.ne.s32.totalorder %s173, %s174
      %p185 = scmp.eq.s32.totalorder %s30, 0
      %p186 = por %p184, %p185
      %p187 = scmp.ne.s32.totalorder %s173, %s174
      %p188 = scmp.eq.s32.totalorder %s31, 1
      %p189 = por %p187, %p188
      %p191 = scmp.ne.s32.totalorder %s174, %s190
      %p192 = scmp.eq.s32.totalorder %s31, 0
      %p193 = por %p191, %p192
      %s194 = ssub.s32 %s32, %s51
      %s195 = ssub.s32 %s34, %s43
      %s196 = sor.u32 %s194, %s195
      %s197 = ssub.s32 %s33, %s47
      %s198 = sor.u32 %s196, %s197
      %p199 = scmp.eq.s32.totalorder %s198, 0
      %s201 = sadd.s32 %s200, 1
      %s202 = scalar_select %p199, %s200, %s201
      %p205 = pneg %p199
      %p206 = scmp.eq.s32.totalorder %s25, 1
      %p207 = por %p205, %p206
      %p208 = scmp.ne.s32.totalorder %s200, %s203
      %p209 = scmp.eq.s32.totalorder %s25, 0
      %p210 = por %p208, %p209
      %p211 = scmp.ne.s32.totalorder %s200, %s203
      %p212 = scmp.eq.s32.totalorder %s30, 1
      %p213 = por %p211, %p212
      %p214 = scmp.ne.s32.totalorder %s203, %s204
      %p215 = scmp.eq.s32.totalorder %s30, 0
      %p216 = por %p214, %p215
      %p217 = scmp.ne.s32.totalorder %s203, %s204
      %p218 = scmp.eq.s32.totalorder %s31, 1
      %p219 = por %p217, %p218
      %p221 = scmp.ne.s32.totalorder %s204, %s220
      %p222 = scmp.eq.s32.totalorder %s31, 0
      %p223 = por %p221, %p222
      %p224 = scmp.le.s32.totalorder 1, %s25
      %p225 = scmp.lt.s32.totalorder %s25, 3
      %p226 = pnand %p224, %p225
      %p227 = pneg %p226
      // Predicated region
      $region9: #{tpu_custom_call.1} parent=5 // pred_check
        _
      $region10: #{tpu_custom_call.1} parent=5 // pred_check_branch
        %229 = sbr.rel (%p226) target = $region12
      $region11: #{tpu_custom_call.1} parent=5 // pred_region
        %s230 = ssub.s32 %s25, 1
        // Predicated region
        $region13: #{tpu_custom_call.1} parent=11 // pred_check
          %p231 = pneg %p128
        $region14: #{tpu_custom_call.1} parent=11 // pred_check_branch
          %233 = sbr.rel (%p231) target = $region16
        $region15: #{tpu_custom_call.1} parent=11 // pred_region
          %s235 = ssub.s32 256, 256
          %236 = vsyncadd [#allocation6], %s235
          %s237 = sadd.s32 %s36, %s37
          %s238 = smul.addr %s237, 64
          %s239 = scalar_lea.hbm %s2, %s238
          %s240 = sshll.u32 [#allocation7], 4
          %s241 = int_to_ptr.vmem [resolvable:$true] %s240
          %246 = dma.hbm_to_vmem [thread:$0]  %s239, 256, %s241, [#allocation6], 64, 64, 4
        $region16: #{tpu_custom_call.1} parent=11 // pred_fallthru
          _
        // Predicated region
        $region17: #{tpu_custom_call.1} parent=11 // pred_check
          %p247 = pneg %p156
        $region18: #{tpu_custom_call.1} parent=11 // pred_check_branch
          %249 = sbr.rel (%p247) target = $region20
        $region19: #{tpu_custom_call.1} parent=11 // pred_region
          %s251 = ssub.s32 256, 256
          %252 = vsyncadd [#allocation9], %s251
          %s253 = sadd.s32 %s36, %s37
          %s254 = smul.addr %s253, 64
          %s255 = scalar_lea.hbm %s3, %s254
          %s256 = sshll.u32 [#allocation8], 4
          %s257 = int_to_ptr.vmem [resolvable:$true] %s256
          %262 = dma.hbm_to_vmem [thread:$0]  %s255, 256, %s257, [#allocation9], 64, 64, 4
        $region20: #{tpu_custom_call.1} parent=11 // pred_fallthru
          _
      $region12: #{tpu_custom_call.1} parent=5 // pred_fallthru
        _
      %p263 = scmp.lt.s32.totalorder %s25, 2
      // Predicated region
      $region21: #{tpu_custom_call.1} parent=5 // pred_check
        %p264 = pneg %p263
      $region22: #{tpu_custom_call.1} parent=5 // pred_check_branch
        %266 = sbr.rel (%p264) target = $region24
      $region23: #{tpu_custom_call.1} parent=5 // pred_region
        // Predicated region
        $region25: #{tpu_custom_call.1} parent=23 // pred_check
          %p267 = pneg %p66
        $region26: #{tpu_custom_call.1} parent=23 // pred_check_branch
          %269 = sbr.rel (%p267) target = $region28
        $region27: #{tpu_custom_call.1} parent=23 // pred_region
          %s270 = sand.u32 %s56, 1
          %s271 = scalar_lea.sflag [#allocation3], %s270
          %s272 = sand.u32 %s56, 1
          %s273 = smul.addr %s272, 4
          %s274 = scalar_lea.vmem [#allocation2], %s273
          %s276 = ssub.s32 64, 64
          %277 = vsyncadd %s271, %s276
          %s278 = sadd.s32 %s33, %s32
          %s279 = smul.addr %s278, 64
          %s280 = scalar_lea.hbm %s0, %s279
          %s282 = sshll.u32 %s274, 4
          %s283 = int_to_ptr.vmem [resolvable:$true] %s282
          %285 = dma.hbm_to_vmem [thread:$0]  %s280, 64, %s283, %s271
        $region28: #{tpu_custom_call.1} parent=23 // pred_fallthru
          _
        // Predicated region
        $region29: #{tpu_custom_call.1} parent=23 // pred_check
          %p286 = pneg %p94
        $region30: #{tpu_custom_call.1} parent=23 // pred_check_branch
          %288 = sbr.rel (%p286) target = $region32
        $region31: #{tpu_custom_call.1} parent=23 // pred_region
          %s289 = sand.u32 %s25, 1
          %s290 = scalar_lea.sflag [#allocation6], %s289
          %s291 = sand.u32 %s84, 1
          %s292 = smul.addr %s291, 4
          %s293 = scalar_lea.vmem [#allocation5], %s292
          %s295 = ssub.s32 64, 64
          %296 = vsyncadd %s290, %s295
          %s297 = sadd.s32 %s33, %s32
          %s298 = smul.addr %s297, 64
          %s299 = scalar_lea.hbm %s1, %s298
          %s301 = sshll.u32 %s293, 4
          %s302 = int_to_ptr.vmem [resolvable:$true] %s301
          %304 = dma.hbm_to_vmem [thread:$0]  %s299, 64, %s302, %s290
        $region32: #{tpu_custom_call.1} parent=23 // pred_fallthru
          _
      $region24: #{tpu_custom_call.1} parent=5 // pred_fallthru
        _
      %p305 = scmp.le.s32.totalorder 1, %s25
      %p306 = scmp.lt.s32.totalorder %s25, 3
      %p307 = pnand %p305, %p306
      %p308 = pneg %p307
      // Predicated region
      $region33: #{tpu_custom_call.1} parent=5 // pred_check
        _
      $region34: #{tpu_custom_call.1} parent=5 // pred_check_branch
        %310 = sbr.rel (%p307) target = $region36
      $region35: #{tpu_custom_call.1} parent=5 // pred_region
        %s311 = ssub.s32 %s25, 1
        %s312 = sand.u32 %s59, 1
        %s313 = scalar_lea.sflag [#allocation3], %s312
        %s314 = sand.u32 %s59, 1
        %s315 = smul.addr %s314, 4
        %s316 = scalar_lea.vmem [#allocation2], %s315
        // Predicated region
        $region37: #{tpu_custom_call.1} parent=35 // pred_check
          %p317 = pneg %p72
        $region38: #{tpu_custom_call.1} parent=35 // pred_check_branch
          %319 = sbr.rel (%p317) target = $region40
        $region39: #{tpu_custom_call.1} parent=35 // pred_region
          %320 = dma.done %s313, 64
        $region40: #{tpu_custom_call.1} parent=35 // pred_fallthru
          _
        %s321 = sand.u32 %s30, 1
        %s322 = scalar_lea.sflag [#allocation6], %s321
        %s323 = sand.u32 %s87, 1
        %s324 = smul.addr %s323, 4
        %s325 = scalar_lea.vmem [#allocation5], %s324
        // Predicated region
        $region41: #{tpu_custom_call.1} parent=35 // pred_check
          %p326 = pneg %p100
        $region42: #{tpu_custom_call.1} parent=35 // pred_check_branch
          %328 = sbr.rel (%p326) target = $region44
        $region43: #{tpu_custom_call.1} parent=35 // pred_region
          %329 = dma.done %s322, 64
        $region44: #{tpu_custom_call.1} parent=35 // pred_fallthru
          _
        // Predicated region
        $region45: #{tpu_custom_call.1} parent=35 // pred_check
          %p330 = pneg %p128
        $region46: #{tpu_custom_call.1} parent=35 // pred_check_branch
          %332 = sbr.rel (%p330) target = $region48
        $region47: #{tpu_custom_call.1} parent=35 // pred_region
          %333 = dma.done [#allocation6], 256
        $region48: #{tpu_custom_call.1} parent=35 // pred_fallthru
          _
        // Predicated region
        $region49: #{tpu_custom_call.1} parent=35 // pred_check
          %p334 = pneg %p156
        $region50: #{tpu_custom_call.1} parent=35 // pred_check_branch
          %336 = sbr.rel (%p334) target = $region52
        $region51: #{tpu_custom_call.1} parent=35 // pred_region
          %337 = dma.done [#allocation9], 256
        $region52: #{tpu_custom_call.1} parent=35 // pred_fallthru
          _
        %s338 = sand.u32 %s59, 1
        %s339 = scalar_lea.sflag [#allocation3], %s338
        %s340 = sand.u32 %s59, 1
        %s341 = smul.addr %s340, 4
        %s342 = scalar_lea.vmem [#allocation2], %s341
        %p343 = pneg %p72
        %p344 = pneg %p69
        %s345 = sand.u32 %s30, 1
        %s346 = scalar_lea.sflag [#allocation6], %s345
        %s347 = sand.u32 %s87, 1
        %s348 = smul.addr %s347, 4
        %s349 = scalar_lea.vmem [#allocation5], %s348
        %p350 = pneg %p100
        %p351 = pneg %p97
        %p352 = pneg %p128
        %p353 = pneg %p125
        %p354 = pneg %p156
        %p355 = pneg %p153
        %p356 = pneg %p186
        %p357 = pneg %p183
        %s358 = sand.u32 %s173, 1
        %s359 = scalar_lea.sflag [#allocation4], %s358
        %s360 = sand.u32 %s173, 1
        %s361 = smul.addr %s360, 4
        %s362 = scalar_lea.vmem [#allocation10], %s361
        %p363 = pneg %p216
        %p364 = pneg %p213
        %s365 = sand.u32 %s203, 1
        %s366 = scalar_lea.sflag [#allocation12], %s365
        %s367 = sand.u32 %s203, 1
        %s368 = smul.addr %s367, 4
        %s369 = scalar_lea.vmem [#allocation11], %s368
        %v370 = vld [vmem:[%s316] sm:$0x1]
        %v371 = vld [vmem:[%s325] sm:$0x1]
        %v372 = vld [vmem:[#allocation7] sm:$0xf]
        %v373 = vld [vmem:[#allocation8] sm:$0xf]
        %v374 = vlaneseq
        %v375 = vshrl.u32 %v374, 7
        %v376 = vsub.s32 0, %v375
        %v377 = vrot.slane %v370, %v376
        %v378 = vmul.f32 %v377, %v372
        %v379 = vlaneseq
        %v380 = vshrl.u32 %v379, 7
        %v381 = vsub.s32 0, %v380
        %v382 = vrot.slane %v371, %v381
        %v383 = vmul.f32 %v382, %v373
        %v384 = vsub.f32 %v378, %v383
        %v385 = vadd.f32 %v384, 0.0
        %v386 = vmul.f32 %v377, %v373
        %v387 = vmul.f32 %v382, %v372
        %v388 = vadd.f32 %v386, %v387
        %v389 = vadd.f32 %v388, 0.0
        %v390 = vld [vmem:[%s316 + $0x1] sm:$0x1]
        %v391 = vld [vmem:[%s325 + $0x1] sm:$0x1]
        %s392 = scalar_lea.vmem [#allocation7], 4
        %v393 = vld [vmem:[%s392] sm:$0xf]
        %s394 = scalar_lea.vmem [#allocation8], 4
        %v395 = vld [vmem:[%s394] sm:$0xf]
        %v396 = vlaneseq
        %v397 = vshrl.u32 %v396, 7
        %v398 = vsub.s32 0, %v397
        %v399 = vrot.slane %v390, %v398
        %v400 = vmul.f32 %v399, %v393
        %v401 = vlaneseq
        %v402 = vshrl.u32 %v401, 7
        %v403 = vsub.s32 0, %v402
        %v404 = vrot.slane %v391, %v403
        %v405 = vmul.f32 %v404, %v395
        %v406 = vsub.f32 %v400, %v405
        %v407 = vadd.f32 %v385, %v406
        %v408 = vmul.f32 %v399, %v395
        %v409 = vmul.f32 %v404, %v393
        %v410 = vadd.f32 %v408, %v409
        %v411 = vadd.f32 %v389, %v410
        %v412 = vld [vmem:[%s316 + $0x2] sm:$0x1]
        %v413 = vld [vmem:[%s325 + $0x2] sm:$0x1]
        %s414 = scalar_lea.vmem [#allocation7], 8
        %v415 = vld [vmem:[%s414] sm:$0xf]
        %s416 = scalar_lea.vmem [#allocation8], 8
        %v417 = vld [vmem:[%s416] sm:$0xf]
        %v418 = vlaneseq
        %v419 = vshrl.u32 %v418, 7
        %v420 = vsub.s32 0, %v419
        %v421 = vrot.slane %v412, %v420
        %v422 = vmul.f32 %v421, %v415
        %v423 = vlaneseq
        %v424 = vshrl.u32 %v423, 7
        %v425 = vsub.s32 0, %v424
        %v426 = vrot.slane %v413, %v425
        %v427 = vmul.f32 %v426, %v417
        %v428 = vsub.f32 %v422, %v427
        %v429 = vadd.f32 %v407, %v428
        %v430 = vmul.f32 %v421, %v417
        %v431 = vmul.f32 %v426, %v415
        %v432 = vadd.f32 %v430, %v431
        %v433 = vadd.f32 %v411, %v432
        %v434 = vld [vmem:[%s316 + $0x3] sm:$0x1]
        %v435 = vld [vmem:[%s325 + $0x3] sm:$0x1]
        %s436 = scalar_lea.vmem [#allocation7], 12
        %v437 = vld [vmem:[%s436] sm:$0xf]
        %s438 = scalar_lea.vmem [#allocation8], 12
        %v439 = vld [vmem:[%s438] sm:$0xf]
        %v440 = vlaneseq
        %v441 = vshrl.u32 %v440, 7
        %v442 = vsub.s32 0, %v441
        %v443 = vrot.slane %v434, %v442
        %v444 = vmul.f32 %v443, %v437
        %v445 = vlaneseq
        %v446 = vshrl.u32 %v445, 7
        %v447 = vsub.s32 0, %v446
        %v448 = vrot.slane %v435, %v447
        %v449 = vmul.f32 %v448, %v439
        %v450 = vsub.f32 %v444, %v449
        %v451 = vadd.f32 %v429, %v450
        %v452 = vmul.f32 %v443, %v439
        %v453 = vmul.f32 %v448, %v437
        %v454 = vadd.f32 %v452, %v453
        %v455 = vadd.f32 %v433, %v454
        %456 = vst [vmem:[%s362] sm:$0xf] %v451
        %457 = vst [vmem:[%s369] sm:$0xf] %v455
        %s458 = sand.u32 %s173, 1
        %s459 = scalar_lea.sflag [#allocation4], %s458
        %s460 = sand.u32 %s173, 1
        %s461 = smul.addr %s460, 4
        %s462 = scalar_lea.vmem [#allocation10], %s461
        %s463 = sand.u32 %s203, 1
        %s464 = scalar_lea.sflag [#allocation12], %s463
        %s465 = sand.u32 %s203, 1
        %s466 = smul.addr %s465, 4
        %s467 = scalar_lea.vmem [#allocation11], %s466
        // Predicated region
        $region53: #{tpu_custom_call.1} parent=35 // pred_check
          %p468 = pneg %p183
        $region54: #{tpu_custom_call.1} parent=35 // pred_check_branch
          %470 = sbr.rel (%p468) target = $region56
        $region55: #{tpu_custom_call.1} parent=35 // pred_region
          %s472 = ssub.s32 64, 64
          %473 = vsyncadd %s459, %s472
          %s474 = sadd.s32 %s36, %s37
          %s475 = sadd.s32 %s474, %s35
          %s476 = smul.addr %s475, 64
          %s477 = scalar_lea.hbm %s4, %s476
          %s479 = sshll.u32 %s462, 4
          %s480 = int_to_ptr.vmem [resolvable:$true] %s479
          %482 = dma.vmem_to_hbm [thread:$0]  %s480, 64, %s477, %s459
        $region56: #{tpu_custom_call.1} parent=35 // pred_fallthru
          _
        // Predicated region
        $region57: #{tpu_custom_call.1} parent=35 // pred_check
          %p483 = pneg %p213
        $region58: #{tpu_custom_call.1} parent=35 // pred_check_branch
          %485 = sbr.rel (%p483) target = $region60
        $region59: #{tpu_custom_call.1} parent=35 // pred_region
          %s487 = ssub.s32 64, 64
          %488 = vsyncadd %s464, %s487
          %s489 = sadd.s32 %s36, %s37
          %s490 = sadd.s32 %s489, %s35
          %s491 = smul.addr %s490, 64
          %s492 = scalar_lea.hbm %s5, %s491
          %s494 = sshll.u32 %s467, 4
          %s495 = int_to_ptr.vmem [resolvable:$true] %s494
          %497 = dma.vmem_to_hbm [thread:$0]  %s495, 64, %s492, %s464
        $region60: #{tpu_custom_call.1} parent=35 // pred_fallthru
          _
      $region36: #{tpu_custom_call.1} parent=5 // pred_fallthru
        _
      %p498 = scmp.le.s32.totalorder 2, %s25
      // Predicated region
      $region61: #{tpu_custom_call.1} parent=5 // pred_check
        %p499 = pneg %p498
      $region62: #{tpu_custom_call.1} parent=5 // pred_check_branch
        %501 = sbr.rel (%p499) target = $region64
      $region63: #{tpu_custom_call.1} parent=5 // pred_region
        %s502 = ssub.s32 %s25, 2
        // Predicated region
        $region65: #{tpu_custom_call.1} parent=63 // pred_check
          %p503 = pneg %p189
        $region66: #{tpu_custom_call.1} parent=63 // pred_check_branch
          %505 = sbr.rel (%p503) target = $region68
        $region67: #{tpu_custom_call.1} parent=63 // pred_region
          %s506 = sand.u32 %s174, 1
          %s507 = scalar_lea.sflag [#allocation4], %s506
          %s508 = sand.u32 %s174, 1
          %s509 = smul.addr %s508, 4
          %s510 = scalar_lea.vmem [#allocation10], %s509
          %511 = dma.done %s507, 64
        $region68: #{tpu_custom_call.1} parent=63 // pred_fallthru
          _
        // Predicated region
        $region69: #{tpu_custom_call.1} parent=63 // pred_check
          %p512 = pneg %p219
        $region70: #{tpu_custom_call.1} parent=63 // pred_check_branch
          %514 = sbr.rel (%p512) target = $region72
        $region71: #{tpu_custom_call.1} parent=63 // pred_region
          %s515 = sand.u32 %s204, 1
          %s516 = scalar_lea.sflag [#allocation12], %s515
          %s517 = sand.u32 %s204, 1
          %s518 = smul.addr %s517, 4
          %s519 = scalar_lea.vmem [#allocation11], %s518
          %520 = dma.done %s516, 64
        $region72: #{tpu_custom_call.1} parent=63 // pred_fallthru
          _
      $region64: #{tpu_custom_call.1} parent=5 // pred_fallthru
        _
    $region6: #{tpu_custom_call.1} parent=1 // loop_footer
      %s29 = sadd.s32 1, %s25
    $region7: #{tpu_custom_call.1} parent=1 // loop_footer_branch
      %24 = sbr.rel target = $region3
    $region8: #{tpu_custom_call.1} parent=1 // loop_exit
      _
    %521 = vsyncpa [#allocation3], 1
    %s522 = scalar_lea.sflag [#allocation3], 1
    %523 = vsyncpa %s522, 1
    %524 = vsyncpa [#allocation6], 1
    %s525 = scalar_lea.sflag [#allocation6], 1
    %526 = vsyncpa %s525, 1
    %527 = vsyncpa [#allocation9], 1
    %528 = vsyncpa [#allocation4], 1
    %s529 = scalar_lea.sflag [#allocation4], 1
    %530 = vsyncpa %s529, 1
    %531 = vsyncpa [#allocation12], 1
    %s532 = scalar_lea.sflag [#allocation12], 1
    %533 = vsyncpa %s532, 1

</llo_original>
